<compile_context>
chip_gen: v6e
topology: v6e:2x2x1
jax: 0.10.0
libtpu: 0.0.40
codegen_flags: <defaults>
</compile_context>

<pallas_src>
import functools

import numpy as np
import jax
import jax.numpy as jnp
from jax.experimental import pallas as pl
from jax.experimental.pallas import tpu as pltpu


def _fourier_loss_kernel(fh_ref, fw_ref, p_ref, t_ref, hi_ref, full_ref,
                         *, H, W, Wp, TB, ch, cw):
    """One grid step: TB (pred, target) image pairs.

    p_ref/t_ref: (1, TB*H, W) bf16  — TB images sublane-stacked.
    fh_ref:      (2H, H)     bf16  — stacked [Re; Im] row-DFT matrix.
    fw_ref:      (W, 2*Wp)   bf16  — fused column-DFT RHS: Re at lanes [0:W],
                                     Im at lanes [Wp:Wp+W] (128-aligned).
    """
    fh = fh_ref[...]
    fw = fw_ref[...]

    # Column DFT for all TB pred / target images at once (images stacked on
    # sublanes -> one wide matmul per tensor, output lanes = 2*Wp).
    a_p = jnp.dot(p_ref[0], fw, preferred_element_type=jnp.float32)  # (TB*H, 2Wp)
    a_t = jnp.dot(t_ref[0], fw, preferred_element_type=jnp.float32)

    def magnitude(a, k):
        ak = a[k * H:(k + 1) * H].astype(jnp.bfloat16)             # (H, 2Wp)
        z = jnp.dot(fh, ak, preferred_element_type=jnp.float32)    # (2H, 2Wp)
        # z[0:H,0:W]=Fr@Ar  z[0:H,Wp:Wp+W]=Fr@Ai  z[H:,0:W]=Fi@Ar  z[H:,Wp:]=Fi@Ai
        yr = z[0:H, 0:W] - z[H:2 * H, Wp:Wp + W]
        yi = z[0:H, Wp:Wp + W] + z[H:2 * H, 0:W]
        return jnp.sqrt(yr * yr + yi * yi)

    # Fused magnitude + |pred - target| accumulation: low live-register count.
    dsum = jnp.zeros((H, W), jnp.float32)
    for k in range(TB):
        dsum = dsum + jnp.abs(magnitude(a_p, k) - magnitude(a_t, k))

    fpart = jnp.sum(dsum)
    if ch > 0 and cw > 0:
        # Binary mask => masked L1 sum == full sum minus the low-freq box.
        hpart = fpart - jnp.sum(
            dsum[H // 2 - ch:H // 2 + ch, W // 2 - cw:W // 2 + cw])
    else:
        hpart = fpart

    hi_ref[...] = jnp.broadcast_to(hpart, hi_ref.shape)
    full_ref[...] = jnp.broadcast_to(fpart, full_ref.shape)


def _vmem_capacity_bytes():
    try:
        cap = int(getattr(pltpu.get_tpu_info(), "vmem_capacity_bytes", 0))
        if cap > 0:
            return cap
    except Exception:
        pass
    return 64 << 20  # conservative (v7x-sized) fallback


def _choose_tb(B, H, W, Wp, vmem_cap):
    # Per-pair cost: double-buffered bf16 inputs + f32 column-DFT outputs.
    per_pair = 8 * H * W + 16 * H * Wp
    # Constants (double-buffered) + per-pair row-DFT temporaries + dsum.
    fixed = 2 * (4 * H * H + 4 * W * Wp) + 48 * H * Wp + 32 * H * W
    budget = int(0.4 * vmem_cap) - fixed
    tb = max(1, min(B, max(budget, per_pair) // per_pair, 8))
    if B >= 2:
        tb = min(tb, (B + 1) // 2)  # keep nb >= 2 so v7x megacore can split
    return int(max(tb, 1))


def fourier_loss(pred, target, high_freq_weight=0.8, cut_ratio=0.2):
    """pred/target: (B, 1, H, W) single-channel, like the PyTorch module."""
    B, C, H, W = pred.shape
    assert C == 1

    # bf16 MXU inputs; f32 accumulation inside the kernel.
    p = pred.reshape(B, H, W).astype(jnp.bfloat16)
    t = target.reshape(B, H, W).astype(jnp.bfloat16)

    Wp = W if W % 128 == 0 else ((W + 127) // 128) * 128
    vmem_cap = _vmem_capacity_bytes()
    TB = _choose_tb(B, H, W, Wp, vmem_cap)
    nb = -(-B // TB)
    b_pad = nb * TB
    if b_pad != B:
        # Zero image pairs contribute exactly 0 to both partial sums.
        pad = jnp.zeros((b_pad - B, H, W), jnp.bfloat16)
        p = jnp.concatenate([p, pad], axis=0)
        t = jnp.concatenate([t, pad], axis=0)
    # Free contiguous reshape: TB images sublane-stacked per grid step.
    p = p.reshape(nb, TB * H, W)
    t = t.reshape(nb, TB * H, W)

    # DFT matrices.  Row DFT stacked [Re; Im] (2H, H); column DFT fused into
    # one (W, 2*Wp) RHS with Re/Im halves at 128-aligned lane offsets.
    kh = jnp.arange(H, dtype=jnp.float32)
    kw = jnp.arange(W, dtype=jnp.float32)
    ang_h = -2.0 * jnp.pi * (kh[:, None] * kh[None, :]) / H
    ang_w = -2.0 * jnp.pi * (kw[:, None] * kw[None, :]) / W
    fh = jnp.concatenate([jnp.cos(ang_h), jnp.sin(ang_h)],
                         axis=0).astype(jnp.bfloat16)            # (2H, H)
    fw = jnp.zeros((W, 2 * Wp), jnp.float32)
    fw = fw.at[:, 0:W].set(jnp.cos(ang_w))
    fw = fw.at[:, Wp:Wp + W].set(jnp.sin(ang_w))
    fw = fw.astype(jnp.bfloat16)                                 # (W, 2*Wp)

    ch, cw = int(H * cut_ratio), int(W * cut_ratio)
    kernel = functools.partial(_fourier_loss_kernel,
                               H=H, W=W, Wp=Wp, TB=TB, ch=ch, cw=cw)

    # VMEM budget: constants + I/O (double-buffered), f32 column-DFT outputs,
    # per-pair row-DFT temporaries, plus slack.
    est = (2 * (4 * H * H + 4 * W * Wp)      # fh + fw, double-buffered
           + 8 * TB * H * W                  # p + t bf16, double-buffered
           + 16 * TB * H * Wp                # a_p + a_t f32
           + 48 * H * Wp + 32 * H * W        # per-pair temporaries + dsum
           + (4 << 20))                      # slack
    vmem_limit = int(min(max(est, 16 << 20), int(0.75 * vmem_cap)))

    full2d = lambda i: (0, 0)
    hi, fl = pl.pallas_call(
        kernel,
        out_shape=(jax.ShapeDtypeStruct((nb, 1, 128), jnp.float32),
                   jax.ShapeDtypeStruct((nb, 1, 128), jnp.float32)),
        grid_spec=pltpu.PrefetchScalarGridSpec(
            num_scalar_prefetch=0,
            grid=(nb,),
            in_specs=[
                pl.BlockSpec((2 * H, H), full2d),                   # fh [Re;Im]
                pl.BlockSpec((W, 2 * Wp), full2d),                  # fused fw
                pl.BlockSpec((1, TB * H, W), lambda i: (i, 0, 0)),  # pred
                pl.BlockSpec((1, TB * H, W), lambda i: (i, 0, 0)),  # target
            ],
            out_specs=[pl.BlockSpec((1, 1, 128), lambda i: (i, 0, 0)),
                       pl.BlockSpec((1, 1, 128), lambda i: (i, 0, 0))],
        ),
        compiler_params=pltpu.CompilerParams(
            dimension_semantics=("parallel",),
            vmem_limit_bytes=vmem_limit),
    )(fh, fw, p, t)

    n = float(B * C * H * W)
    hi_sum = jnp.sum(hi[:, 0, 0])
    fl_sum = jnp.sum(fl[:, 0, 0])
    return (high_freq_weight * hi_sum + (1.0 - high_freq_weight) * fl_sum) / n


def _reference_fourier_loss(pred, target, high_freq_weight=0.8, cut_ratio=0.2):
    pred_fft = jnp.fft.fft2(pred)
    target_fft = jnp.fft.fft2(target)
    pm = jnp.abs(pred_fft)
    tm = jnp.abs(target_fft)
    _, _, h, w = pred.shape
    ch, cw = int(h * cut_ratio), int(w * cut_ratio)
    mask = jnp.ones_like(pm)
    mask = mask.at[..., h // 2 - ch:h // 2 + ch, w // 2 - cw:w // 2 + cw].set(0)
    high_loss = jnp.mean(jnp.abs(pm * mask - tm * mask))
    full_loss = jnp.mean(jnp.abs(pm - tm))
    return high_freq_weight * high_loss + (1.0 - high_freq_weight) * full_loss


if __name__ == "__main__":
    key = jax.random.PRNGKey(0)
    k1, k2 = jax.random.split(key)
    pred = jax.random.normal(k1, (2, 1, 16, 16), dtype=jnp.float32)
    target = jax.random.normal(k2, (2, 1, 16, 16), dtype=jnp.float32)

    loss = jax.block_until_ready(fourier_loss(pred, target))
    ref = jax.block_until_ready(_reference_fourier_loss(pred, target))

    # bf16 matmul inputs with f32 accumulation: ~<1% loss error at this size.
    np.testing.assert_allclose(np.asarray(loss), np.asarray(ref),
                               rtol=3e-2, atol=1e-2)
    print("KERNEL_OK")
</pallas_src>

<mosaic_0001>
module attributes {stable_mosaic.version = 11 : i64} {
  func.func @_fourier_loss_kernel(%arg0: i32, %arg1: memref<32x16xbf16, #tpu.memory_space<vmem>>, %arg2: memref<16x256xbf16, #tpu.memory_space<vmem>>, %arg3: memref<1x16x16xbf16, #tpu.memory_space<vmem>>, %arg4: memref<1x16x16xbf16, #tpu.memory_space<vmem>>, %arg5: memref<1x1x128xf32, #tpu.memory_space<vmem>>, %arg6: memref<1x1x128xf32, #tpu.memory_space<vmem>>) attributes {dimension_semantics = [#tpu.dimension_semantics<parallel>], iteration_bounds = array<i64: 2>, scalar_prefetch = 0 : i64, scratch_operands = 0 : i64, tpu.core_type = #tpu.core_type<tc>, window_params = [{pipeline_mode = #tpu.pipeline_mode<synchronous>, transform_indices = @transform_0, window_bounds = array<i64: 32, 16>}, {pipeline_mode = #tpu.pipeline_mode<synchronous>, transform_indices = @transform_1, window_bounds = array<i64: 16, 256>}, {transform_indices = @transform_2, window_bounds = array<i64: 1, 16, 16>}, {transform_indices = @transform_3, window_bounds = array<i64: 1, 16, 16>}, {transform_indices = @transform_4, window_bounds = array<i64: 1, 1, 128>}, {transform_indices = @transform_5, window_bounds = array<i64: 1, 1, 128>}]} {
    %c0 = arith.constant 0 : index
    %c0_0 = arith.constant 0 : index
    %0 = vector.load %arg1[%c0, %c0_0] : memref<32x16xbf16, #tpu.memory_space<vmem>>, vector<32x16xbf16>
    %c0_1 = arith.constant 0 : index
    %c0_2 = arith.constant 0 : index
    %1 = vector.load %arg2[%c0_1, %c0_2] : memref<16x256xbf16, #tpu.memory_space<vmem>>, vector<16x256xbf16>
    %c0_3 = arith.constant 0 : index
    %c0_4 = arith.constant 0 : index
    %c0_5 = arith.constant 0 : index
    %2 = vector.load %arg3[%c0_3, %c0_4, %c0_5] : memref<1x16x16xbf16, #tpu.memory_space<vmem>>, vector<1x16x16xbf16>
    %3 = vector.shape_cast %2 : vector<1x16x16xbf16> to vector<16x16xbf16>
    %cst = arith.constant dense<0.000000e+00> : vector<16x256xf32>
    %4 = tpu.matmul %3, %1, %cst {dimension_numbers = #tpu.dot_dimension_numbers<[1], [0], [0], [1], [0, 0, 1, 1], [], []>} : vector<16x16xbf16>, vector<16x256xbf16>, vector<16x256xf32> -> vector<16x256xf32>
    %c0_6 = arith.constant 0 : index
    %c0_7 = arith.constant 0 : index
    %c0_8 = arith.constant 0 : index
    %5 = vector.load %arg4[%c0_6, %c0_7, %c0_8] : memref<1x16x16xbf16, #tpu.memory_space<vmem>>, vector<1x16x16xbf16>
    %6 = vector.shape_cast %5 : vector<1x16x16xbf16> to vector<16x16xbf16>
    %cst_9 = arith.constant dense<0.000000e+00> : vector<16x256xf32>
    %7 = tpu.matmul %6, %1, %cst_9 {dimension_numbers = #tpu.dot_dimension_numbers<[1], [0], [0], [1], [0, 0, 1, 1], [], []>} : vector<16x16xbf16>, vector<16x256xbf16>, vector<16x256xf32> -> vector<16x256xf32>
    %cst_10 = arith.constant 0.000000e+00 : f32
    %8 = vector.broadcast %cst_10 : f32 to vector<16x16xf32>
    %9 = arith.truncf %4 : vector<16x256xf32> to vector<16x256xbf16>
    %cst_11 = arith.constant dense<0.000000e+00> : vector<32x256xf32>
    %10 = tpu.matmul %0, %9, %cst_11 {dimension_numbers = #tpu.dot_dimension_numbers<[1], [0], [0], [1], [0, 0, 1, 1], [], []>} : vector<32x16xbf16>, vector<16x256xbf16>, vector<32x256xf32> -> vector<32x256xf32>
    %11 = vector.extract_strided_slice %10 {offsets = [0, 0], sizes = [16, 16], strides = [1, 1]} : vector<32x256xf32> to vector<16x16xf32>
    %12 = vector.extract_strided_slice %10 {offsets = [16, 128], sizes = [16, 16], strides = [1, 1]} : vector<32x256xf32> to vector<16x16xf32>
    %13 = arith.subf %11, %12 : vector<16x16xf32>
    %14 = vector.extract_strided_slice %10 {offsets = [0, 128], sizes = [16, 16], strides = [1, 1]} : vector<32x256xf32> to vector<16x16xf32>
    %15 = vector.extract_strided_slice %10 {offsets = [16, 0], sizes = [16, 16], strides = [1, 1]} : vector<32x256xf32> to vector<16x16xf32>
    %16 = arith.addf %14, %15 : vector<16x16xf32>
    %17 = arith.mulf %13, %13 : vector<16x16xf32>
    %18 = arith.mulf %16, %16 : vector<16x16xf32>
    %19 = arith.addf %17, %18 : vector<16x16xf32>
    %20 = math.sqrt %19 : vector<16x16xf32>
    %21 = arith.truncf %7 : vector<16x256xf32> to vector<16x256xbf16>
    %cst_12 = arith.constant dense<0.000000e+00> : vector<32x256xf32>
    %22 = tpu.matmul %0, %21, %cst_12 {dimension_numbers = #tpu.dot_dimension_numbers<[1], [0], [0], [1], [0, 0, 1, 1], [], []>} : vector<32x16xbf16>, vector<16x256xbf16>, vector<32x256xf32> -> vector<32x256xf32>
    %23 = vector.extract_strided_slice %22 {offsets = [0, 0], sizes = [16, 16], strides = [1, 1]} : vector<32x256xf32> to vector<16x16xf32>
    %24 = vector.extract_strided_slice %22 {offsets = [16, 128], sizes = [16, 16], strides = [1, 1]} : vector<32x256xf32> to vector<16x16xf32>
    %25 = arith.subf %23, %24 : vector<16x16xf32>
    %26 = vector.extract_strided_slice %22 {offsets = [0, 128], sizes = [16, 16], strides = [1, 1]} : vector<32x256xf32> to vector<16x16xf32>
    %27 = vector.extract_strided_slice %22 {offsets = [16, 0], sizes = [16, 16], strides = [1, 1]} : vector<32x256xf32> to vector<16x16xf32>
    %28 = arith.addf %26, %27 : vector<16x16xf32>
    %29 = arith.mulf %25, %25 : vector<16x16xf32>
    %30 = arith.mulf %28, %28 : vector<16x16xf32>
    %31 = arith.addf %29, %30 : vector<16x16xf32>
    %32 = math.sqrt %31 : vector<16x16xf32>
    %33 = arith.subf %20, %32 : vector<16x16xf32>
    %34 = math.absf %33 : vector<16x16xf32>
    %35 = arith.addf %8, %34 : vector<16x16xf32>
    %36 = vector.shape_cast %35 : vector<16x16xf32> to vector<1x16x16xf32>
    %cst_13 = arith.constant dense<0.000000e+00> : vector<1xf32>
    %37 = vector.multi_reduction <add>, %36, %cst_13 [1, 2] : vector<1x16x16xf32> to vector<1xf32>
    %38 = vector.shape_cast %37 : vector<1xf32> to vector<1x1x1xf32>
    %39 = vector.extract %38[0, 0, 0] : f32 from vector<1x1x1xf32>
    %40 = vector.extract_strided_slice %35 {offsets = [5, 5], sizes = [6, 6], strides = [1, 1]} : vector<16x16xf32> to vector<6x6xf32>
    %41 = vector.shape_cast %40 : vector<6x6xf32> to vector<1x6x6xf32>
    %cst_14 = arith.constant dense<0.000000e+00> : vector<1xf32>
    %42 = vector.multi_reduction <add>, %41, %cst_14 [1, 2] : vector<1x6x6xf32> to vector<1xf32>
    %43 = vector.shape_cast %42 : vector<1xf32> to vector<1x1x1xf32>
    %44 = vector.extract %43[0, 0, 0] : f32 from vector<1x1x1xf32>
    %45 = arith.subf %39, %44 : f32
    %46 = vector.broadcast %45 : f32 to vector<1x1x128xf32>
    %c0_15 = arith.constant 0 : index
    %c0_16 = arith.constant 0 : index
    %c0_17 = arith.constant 0 : index
    %47 = vector.load %arg5[%c0_15, %c0_16, %c0_17] : memref<1x1x128xf32, #tpu.memory_space<vmem>>, vector<1x1x128xf32>
    tpu.vector_store %arg5[%c0_15, %c0_16, %c0_17], %46 {strides = array<i32>} : memref<1x1x128xf32, #tpu.memory_space<vmem>>, vector<1x1x128xf32>,
    %48 = vector.broadcast %39 : f32 to vector<1x1x128xf32>
    %c0_18 = arith.constant 0 : index
    %c0_19 = arith.constant 0 : index
    %c0_20 = arith.constant 0 : index
    %49 = vector.load %arg6[%c0_18, %c0_19, %c0_20] : memref<1x1x128xf32, #tpu.memory_space<vmem>>, vector<1x1x128xf32>
    tpu.vector_store %arg6[%c0_18, %c0_19, %c0_20], %48 {strides = array<i32>} : memref<1x1x128xf32, #tpu.memory_space<vmem>>, vector<1x1x128xf32>,
    return
  }
  func.func @transform_0(%arg0: i32) -> (i32, i32) {
    %c0_i32 = arith.constant 0 : i32
    %c0_i32_0 = arith.constant 0 : i32
    %c0_i32_1 = arith.constant 0 : i32
    return %c0_i32, %c0_i32_0 : i32, i32
  }
  func.func @transform_1(%arg0: i32) -> (i32, i32) {
    %c0_i32 = arith.constant 0 : i32
    %c0_i32_0 = arith.constant 0 : i32
    %c0_i32_1 = arith.constant 0 : i32
    return %c0_i32, %c0_i32_0 : i32, i32
  }
  func.func @transform_2(%arg0: i32) -> (i32, i32, i32) {
    %c0_i32 = arith.constant 0 : i32
    %c0_i32_0 = arith.constant 0 : i32
    %c0_i32_1 = arith.constant 0 : i32
    return %arg0, %c0_i32, %c0_i32_0 : i32, i32, i32
  }
  func.func @transform_3(%arg0: i32) -> (i32, i32, i32) {
    %c0_i32 = arith.constant 0 : i32
    %c0_i32_0 = arith.constant 0 : i32
    %c0_i32_1 = arith.constant 0 : i32
    return %arg0, %c0_i32, %c0_i32_0 : i32, i32, i32
  }
  func.func @transform_4(%arg0: i32) -> (i32, i32, i32) {
    %c0_i32 = arith.constant 0 : i32
    %c0_i32_0 = arith.constant 0 : i32
    %c0_i32_1 = arith.constant 0 : i32
    return %arg0, %c0_i32, %c0_i32_0 : i32, i32, i32
  }
  func.func @transform_5(%arg0: i32) -> (i32, i32, i32) {
    %c0_i32 = arith.constant 0 : i32
    %c0_i32_0 = arith.constant 0 : i32
    %c0_i32_1 = arith.constant 0 : i32
    return %arg0, %c0_i32, %c0_i32_0 : i32, i32, i32
  }
}

</mosaic_0001>

<llo_original>
// kernel: tpu_custom_call.1
$region0: #{tpu_custom_call.1}
  #allocation0 [shape = 'u32[]', space=smem, size = 0x4, offset = 0x4, fixed_abs, tag = 'smem constant byte address 0x4 - core index']
  #allocation1 [shape = 'u32[144,128]{1,0:T(1,128)}', space=vmem, size = 0x12000, scoped, tag = 'internal scratch']
  %s0 = inlined_call_operand.vmem [shape: bf16[32,16], index: 0, kind: input, shape index: {}]
  %s1 = inlined_call_operand.vmem [shape: bf16[16,256], index: 1, kind: input, shape index: {}]
  %s2 = inlined_call_operand.hbm [shape: bf16[2,16,16], index: 2, kind: input, shape index: {}]
  %s3 = inlined_call_operand.hbm [shape: bf16[2,16,16], index: 3, kind: input, shape index: {}]
  %s4 = inlined_call_operand.hbm [shape: f32[2,1,128], index: 4, kind: output, shape index: {0}]
  %s5 = inlined_call_operand.hbm [shape: f32[2,1,128], index: 5, kind: output, shape index: {1}]
  %6 = xla_tuple %s4, %s5
  %s7 = sld [smem:[#allocation0]]
  $region65: #{tpu_custom_call.1} parent=0
    _
  %s9 = ssub.s32 1, %s7
  %s10 = scalar_select 0, %s9, %s7
  $region1: #{tpu_custom_call.1} parent=0
    #allocation2 [shape = 'u8[8192]{0}', space=vmem, size = 0x2000, scoped, tag = 'input window, operand 2']
    #allocation3 [shape = 's32[2]{0}', space=sflag, size = 0x8, scoped, tag = 'scoped memory for tpu_custom_call.1']
    #allocation4 [shape = 's32[2]{0}', space=sflag, size = 0x8, scoped, tag = 'scoped memory for tpu_custom_call.1']
    #allocation5 [shape = 'u8[8192]{0}', space=vmem, size = 0x2000, scoped, tag = 'input window, operand 3']
    #allocation6 [shape = 's32[2]{0}', space=sflag, size = 0x8, scoped, tag = 'scoped memory for tpu_custom_call.1']
    #allocation7 [shape = 'u8[1024]{0}', space=vmem, size = 0x400, scoped, tag = 'output window, operand 0']
    #allocation8 [shape = 'u8[1024]{0}', space=vmem, size = 0x400, scoped, tag = 'output window, operand 1']
    #allocation9 [shape = 's32[2]{0}', space=sflag, size = 0x8, scoped, tag = 'scoped memory for tpu_custom_call.1']
    %11 = vsyncpa [#allocation3], 0
    %s12 = scalar_lea.sflag [#allocation3], 1
    %13 = vsyncpa %s12, 0
    %14 = vsyncpa [#allocation6], 0
    %s15 = scalar_lea.sflag [#allocation6], 1
    %16 = vsyncpa %s15, 0
    %17 = vsyncpa [#allocation4], 0
    %s18 = scalar_lea.sflag [#allocation4], 1
    %19 = vsyncpa %s18, 0
    %20 = vsyncpa [#allocation9], 0
    %s21 = scalar_lea.sflag [#allocation9], 1
    %22 = vsyncpa %s21, 0
    loop: start=0, step=1, limit=4
    $region2: #{tpu_custom_call.1} parent=1 // loop_pre_header
      _
    $region3: #{tpu_custom_call.1} parent=1 // loop_header
      %s24 = sphi 0, %s28
      %p25 = scmp.ge.s32.totalorder %s24, 4
      %s32 = sphi 0, %s32
      %s34 = sphi 0, %s32
      %s35 = sphi 0, %s34
      %s49 = sphi 0, %s35
      %s53 = sphi 0, %s53
      %s55 = sphi 0, %s53
      %s56 = sphi 0, %s55
      %s70 = sphi 0, %s56
      %s76 = sphi 0, %s78
      %s79 = sphi 0, %s76
      %s80 = sphi 0, %s79
      %s96 = sphi 0, %s80
      %s102 = sphi 0, %s104
      %s105 = sphi 0, %s102
      %s106 = sphi 0, %s105
      %s122 = sphi 0, %s106
      %s128 = sphi 0, %s130
      %s131 = sphi 0, %s128
      %s132 = sphi 0, %s131
      %s148 = sphi 0, %s132
      %s154 = sphi 0, %s156
      %s157 = sphi 0, %s154
      %s158 = sphi 0, %s157
      %s174 = sphi 0, %s158
    $region4: #{tpu_custom_call.1} parent=1 // loop_header_branch
      %27 = sbr.rel (%p25) target = $region8
    $region5: #{tpu_custom_call.1} parent=1 // loop_body
      %s29 = ssub.s32 %s24, 1
      %s30 = ssub.s32 %s24, 2
      %s31 = sadd.s32 %s24, 1
      %s33 = sadd.s32 %s32, 1
      %p36 = scmp.eq.s32.totalorder %s24, 1
      %p37 = scmp.ne.s32.totalorder %s32, %s34
      %p38 = scmp.eq.s32.totalorder %s24, 0
      %p39 = por %p37, %p38
      %p40 = scmp.ne.s32.totalorder %s32, %s34
      %p41 = scmp.eq.s32.totalorder %s29, 1
      %p42 = por %p40, %p41
      %p43 = scmp.ne.s32.totalorder %s34, %s35
      %p44 = scmp.eq.s32.totalorder %s29, 0
      %p45 = por %p43, %p44
      %p46 = scmp.ne.s32.totalorder %s34, %s35
      %p47 = scmp.eq.s32.totalorder %s30, 1
      %p48 = por %p46, %p47
      %p50 = scmp.ne.s32.totalorder %s35, %s49
      %p51 = scmp.eq.s32.totalorder %s30, 0
      %p52 = por %p50, %p51
      %s54 = sadd.s32 %s53, 1
      %p57 = scmp.eq.s32.totalorder %s24, 1
      %p58 = scmp.ne.s32.totalorder %s53, %s55
      %p59 = scmp.eq.s32.totalorder %s24, 0
      %p60 = por %p58, %p59
      %p61 = scmp.ne.s32.totalorder %s53, %s55
      %p62 = scmp.eq.s32.totalorder %s29, 1
      %p63 = por %p61, %p62
      %p64 = scmp.ne.s32.totalorder %s55, %s56
      %p65 = scmp.eq.s32.totalorder %s29, 0
      %p66 = por %p64, %p65
      %p67 = scmp.ne.s32.totalorder %s55, %s56
      %p68 = scmp.eq.s32.totalorder %s30, 1
      %p69 = por %p67, %p68
      %p71 = scmp.ne.s32.totalorder %s56, %s70
      %p72 = scmp.eq.s32.totalorder %s30, 0
      %p73 = por %p71, %p72
      %s74 = ssub.s32 %s24, %s31
      %p75 = scmp.eq.s32.totalorder %s74, 0
      %s77 = sadd.s32 %s76, 1
      %s78 = scalar_select %p75, %s76, %s77
      %p81 = pneg %p75
      %p82 = scmp.eq.s32.totalorder %s24, 1
      %p83 = por %p81, %p82
      %p84 = scmp.ne.s32.totalorder %s76, %s79
      %p85 = scmp.eq.s32.totalorder %s24, 0
      %p86 = por %p84, %p85
      %p87 = scmp.ne.s32.totalorder %s76, %s79
      %p88 = scmp.eq.s32.totalorder %s29, 1
      %p89 = por %p87, %p88
      %p90 = scmp.ne.s32.totalorder %s79, %s80
      %p91 = scmp.eq.s32.totalorder %s29, 0
      %p92 = por %p90, %p91
      %p93 = scmp.ne.s32.totalorder %s79, %s80
      %p94 = scmp.eq.s32.totalorder %s30, 1
      %p95 = por %p93, %p94
      %p97 = scmp.ne.s32.totalorder %s80, %s96
      %p98 = scmp.eq.s32.totalorder %s30, 0
      %p99 = por %p97, %p98
      %s100 = ssub.s32 %s24, %s31
      %p101 = scmp.eq.s32.totalorder %s100, 0
      %s103 = sadd.s32 %s102, 1
      %s104 = scalar_select %p101, %s102, %s103
      %p107 = pneg %p101
      %p108 = scmp.eq.s32.totalorder %s24, 1
      %p109 = por %p107, %p108
      %p110 = scmp.ne.s32.totalorder %s102, %s105
      %p111 = scmp.eq.s32.totalorder %s24, 0
      %p112 = por %p110, %p111
      %p113 = scmp.ne.s32.totalorder %s102, %s105
      %p114 = scmp.eq.s32.totalorder %s29, 1
      %p115 = por %p113, %p114
      %p116 = scmp.ne.s32.totalorder %s105, %s106
      %p117 = scmp.eq.s32.totalorder %s29, 0
      %p118 = por %p116, %p117
      %p119 = scmp.ne.s32.totalorder %s105, %s106
      %p120 = scmp.eq.s32.totalorder %s30, 1
      %p121 = por %p119, %p120
      %p123 = scmp.ne.s32.totalorder %s106, %s122
      %p124 = scmp.eq.s32.totalorder %s30, 0
      %p125 = por %p123, %p124
      %s126 = ssub.s32 %s24, %s31
      %p127 = scmp.eq.s32.totalorder %s126, 0
      %s129 = sadd.s32 %s128, 1
      %s130 = scalar_select %p127, %s128, %s129
      %p133 = pneg %p127
      %p134 = scmp.eq.s32.totalorder %s24, 1
      %p135 = por %p133, %p134
      %p136 = scmp.ne.s32.totalorder %s128, %s131
      %p137 = scmp.eq.s32.totalorder %s24, 0
      %p138 = por %p136, %p137
      %p139 = scmp.ne.s32.totalorder %s128, %s131
      %p140 = scmp.eq.s32.totalorder %s29, 1
      %p141 = por %p139, %p140
      %p142 = scmp.ne.s32.totalorder %s131, %s132
      %p143 = scmp.eq.s32.totalorder %s29, 0
      %p144 = por %p142, %p143
      %p145 = scmp.ne.s32.totalorder %s131, %s132
      %p146 = scmp.eq.s32.totalorder %s30, 1
      %p147 = por %p145, %p146
      %p149 = scmp.ne.s32.totalorder %s132, %s148
      %p150 = scmp.eq.s32.totalorder %s30, 0
      %p151 = por %p149, %p150
      %s152 = ssub.s32 %s24, %s31
      %p153 = scmp.eq.s32.totalorder %s152, 0
      %s155 = sadd.s32 %s154, 1
      %s156 = scalar_select %p153, %s154, %s155
      %p159 = pneg %p153
      %p160 = scmp.eq.s32.totalorder %s24, 1
      %p161 = por %p159, %p160
      %p162 = scmp.ne.s32.totalorder %s154, %s157
      %p163 = scmp.eq.s32.totalorder %s24, 0
      %p164 = por %p162, %p163
      %p165 = scmp.ne.s32.totalorder %s154, %s157
      %p166 = scmp.eq.s32.totalorder %s29, 1
      %p167 = por %p165, %p166
      %p168 = scmp.ne.s32.totalorder %s157, %s158
      %p169 = scmp.eq.s32.totalorder %s29, 0
      %p170 = por %p168, %p169
      %p171 = scmp.ne.s32.totalorder %s157, %s158
      %p172 = scmp.eq.s32.totalorder %s30, 1
      %p173 = por %p171, %p172
      %p175 = scmp.ne.s32.totalorder %s158, %s174
      %p176 = scmp.eq.s32.totalorder %s30, 0
      %p177 = por %p175, %p176
      %p178 = scmp.le.s32.totalorder 1, %s24
      %p179 = scmp.lt.s32.totalorder %s24, 3
      %p180 = pnand %p178, %p179
      %p181 = pneg %p180
      // Predicated region
      $region9: #{tpu_custom_call.1} parent=5 // pred_check
        _
      $region10: #{tpu_custom_call.1} parent=5 // pred_check_branch
        %183 = sbr.rel (%p180) target = $region12
      $region11: #{tpu_custom_call.1} parent=5 // pred_region
        %s184 = ssub.s32 %s24, 1
        // Predicated region
        $region13: #{tpu_custom_call.1} parent=11 // pred_check
          %p185 = pneg %p45
        $region14: #{tpu_custom_call.1} parent=11 // pred_check_branch
          %187 = sbr.rel (%p185) target = $region16
        $region15: #{tpu_custom_call.1} parent=11 // pred_region
          _
        $region16: #{tpu_custom_call.1} parent=11 // pred_fallthru
          _
        // Predicated region
        $region17: #{tpu_custom_call.1} parent=11 // pred_check
          %p188 = pneg %p66
        $region18: #{tpu_custom_call.1} parent=11 // pred_check_branch
          %190 = sbr.rel (%p188) target = $region20
        $region19: #{tpu_custom_call.1} parent=11 // pred_region
          _
        $region20: #{tpu_custom_call.1} parent=11 // pred_fallthru
          _
      $region12: #{tpu_custom_call.1} parent=5 // pred_fallthru
        _
      %p191 = scmp.lt.s32.totalorder %s24, 2
      // Predicated region
      $region21: #{tpu_custom_call.1} parent=5 // pred_check
        %p192 = pneg %p191
      $region22: #{tpu_custom_call.1} parent=5 // pred_check_branch
        %194 = sbr.rel (%p192) target = $region24
      $region23: #{tpu_custom_call.1} parent=5 // pred_region
        // Predicated region
        $region25: #{tpu_custom_call.1} parent=23 // pred_check
          %p195 = pneg %p86
        $region26: #{tpu_custom_call.1} parent=23 // pred_check_branch
          %197 = sbr.rel (%p195) target = $region28
        $region27: #{tpu_custom_call.1} parent=23 // pred_region
          %s198 = sand.u32 %s76, 1
          %s199 = scalar_lea.sflag [#allocation3], %s198
          %s200 = sand.u32 %s76, 1
          %s201 = smul.addr %s200, 8
          %s202 = scalar_lea.vmem [#allocation2], %s201
          %s204 = ssub.s32 128, 128
          %205 = vsyncadd %s199, %s204
          %s206 = smul.addr %s24, 2
          %s207 = smul.addr %s206, 64
          %s208 = scalar_lea.hbm %s2, %s207
          %s209 = sshll.u32 %s202, 4
          %s210 = int_to_ptr.vmem [resolvable:$true] %s209
          %215 = dma.hbm_to_vmem [thread:$0]  %s208, 128, %s210, %s199, 64, 64, 4
        $region28: #{tpu_custom_call.1} parent=23 // pred_fallthru
          _
        // Predicated region
        $region29: #{tpu_custom_call.1} parent=23 // pred_check
          %p216 = pneg %p112
        $region30: #{tpu_custom_call.1} parent=23 // pred_check_branch
          %218 = sbr.rel (%p216) target = $region32
        $region31: #{tpu_custom_call.1} parent=23 // pred_region
          %s219 = sand.u32 %s102, 1
          %s220 = scalar_lea.sflag [#allocation6], %s219
          %s221 = sand.u32 %s102, 1
          %s222 = smul.addr %s221, 8
          %s223 = scalar_lea.vmem [#allocation5], %s222
          %s225 = ssub.s32 128, 128
          %226 = vsyncadd %s220, %s225
          %s227 = smul.addr %s24, 2
          %s228 = smul.addr %s227, 64
          %s229 = scalar_lea.hbm %s3, %s228
          %s230 = sshll.u32 %s223, 4
          %s231 = int_to_ptr.vmem [resolvable:$true] %s230
          %236 = dma.hbm_to_vmem [thread:$0]  %s229, 128, %s231, %s220, 64, 64, 4
        $region32: #{tpu_custom_call.1} parent=23 // pred_fallthru
          _
      $region24: #{tpu_custom_call.1} parent=5 // pred_fallthru
        _
      %p237 = scmp.le.s32.totalorder 1, %s24
      %p238 = scmp.lt.s32.totalorder %s24, 3
      %p239 = pnand %p237, %p238
      %p240 = pneg %p239
      // Predicated region
      $region33: #{tpu_custom_call.1} parent=5 // pred_check
        _
      $region34: #{tpu_custom_call.1} parent=5 // pred_check_branch
        %242 = sbr.rel (%p239) target = $region36
      $region35: #{tpu_custom_call.1} parent=5 // pred_region
        %s243 = ssub.s32 %s24, 1
        %s244 = sand.u32 %s79, 1
        %s245 = scalar_lea.sflag [#allocation3], %s244
        %s246 = sand.u32 %s79, 1
        %s247 = smul.addr %s246, 8
        %s248 = scalar_lea.vmem [#allocation2], %s247
        // Predicated region
        $region37: #{tpu_custom_call.1} parent=35 // pred_check
          %p249 = pneg %p92
        $region38: #{tpu_custom_call.1} parent=35 // pred_check_branch
          %251 = sbr.rel (%p249) target = $region40
        $region39: #{tpu_custom_call.1} parent=35 // pred_region
          %252 = dma.done %s245, 128
        $region40: #{tpu_custom_call.1} parent=35 // pred_fallthru
          _
        %s253 = sand.u32 %s105, 1
        %s254 = scalar_lea.sflag [#allocation6], %s253
        %s255 = sand.u32 %s105, 1
        %s256 = smul.addr %s255, 8
        %s257 = scalar_lea.vmem [#allocation5], %s256
        // Predicated region
        $region41: #{tpu_custom_call.1} parent=35 // pred_check
          %p258 = pneg %p118
        $region42: #{tpu_custom_call.1} parent=35 // pred_check_branch
          %260 = sbr.rel (%p258) target = $region44
        $region43: #{tpu_custom_call.1} parent=35 // pred_region
          %261 = dma.done %s254, 128
        $region44: #{tpu_custom_call.1} parent=35 // pred_fallthru
          _
        %p262 = pneg %p45
        %p263 = pneg %p42
        %p264 = pneg %p66
        %p265 = pneg %p63
        %s266 = sand.u32 %s79, 1
        %s267 = scalar_lea.sflag [#allocation3], %s266
        %s268 = sand.u32 %s79, 1
        %s269 = smul.addr %s268, 8
        %s270 = scalar_lea.vmem [#allocation2], %s269
        %p271 = pneg %p92
        %p272 = pneg %p89
        %s273 = sand.u32 %s105, 1
        %s274 = scalar_lea.sflag [#allocation6], %s273
        %s275 = sand.u32 %s105, 1
        %s276 = smul.addr %s275, 8
        %s277 = scalar_lea.vmem [#allocation5], %s276
        %p278 = pneg %p118
        %p279 = pneg %p115
        %p280 = pneg %p144
        %p281 = pneg %p141
        %s282 = sand.u32 %s131, 1
        %s283 = scalar_lea.sflag [#allocation4], %s282
        %s284 = sand.u32 %s131, 1
        %s285 = scalar_lea.vmem [#allocation7], %s284
        %p286 = pneg %p170
        %p287 = pneg %p167
        %s288 = sand.u32 %s157, 1
        %s289 = scalar_lea.sflag [#allocation9], %s288
        %s290 = sand.u32 %s157, 1
        %s291 = scalar_lea.vmem [#allocation8], %s290
        %v293 = vld [vmem:[%s0] sm:$0xf]
        %v294 = vld [vmem:[%s0 + $0x4] sm:$0xf]
        %v295 = vld [vmem:[%s0 + $0x8] sm:$0xf]
        %v296 = vld [vmem:[%s0 + $0xc] sm:$0xf]
        %v297 = vld [vmem:[%s1] sm:$0xff]
        %v298 = vld [vmem:[%s1 + $0x8] sm:$0xff]
        %v299 = vld [vmem:[%s248] sm:$0xf]
        %v300 = vld [vmem:[%s248 + $0x4] sm:$0xf]
        %v303 = vunpack.c.l.b16 %v299
        %v304 = vunpack.c.l.b16 %v300
        %v305 = vpack.c.b16 %v304, %v303
        %v308 = vunpack.c.l.b16 %v297
        %v309 = vunpack.c.h.b16 %v297
        %v310 = vunpack.c.l.b16 %v298
        %v311 = vunpack.c.h.b16 %v298
        %v312 = vpack.c.b16 %v310, %v308
        %v313 = vpack.c.b16 %v311, %v309
        %vm316 = vcmask 130048
        %v318 = vsel %vm316, %v305, 0
        %320 = vmatprep.subr.bf16.mxu0 0
        %321 = vmatpush1.bf16.msra.mxu0 0
        %322 = vmatprep.subr.bf16.mxu0 0
        %323 = vmatpush1.bf16.msra.mxu0 0
        %324 = vmatprep.subr.bf16.mxu0 0
        %325 = vmatpush1.bf16.msra.mxu0 0
        %326 = vmatprep.subr.bf16.mxu0 0
        %327 = vmatpush1.bf16.msra.mxu0 0
        %328 = vmatprep.subr.bf16.mxu0 0
        %329 = vmatpush1.bf16.msra.mxu0 0
        %330 = vmatprep.subr.bf16.mxu0 0
        %331 = vmatpush1.bf16.msra.mxu0 0
        %332 = vmatprep.subr.bf16.mxu0 0
        %333 = vmatpush1.bf16.msra.mxu0 0
        %334 = vmatprep.subr.bf16.mxu0 %v313
        %335 = vmatpush1.bf16.msra.mxu0 %v312
        %336 = vmatprep.subr.bf16.mxu0 0
        %337 = vmatpush2.bf16.msra.mxu0 0
        %338 = vmatprep.subr.bf16.mxu0 0
        %339 = vmatpush2.bf16.msra.mxu0 0
        %340 = vmatprep.subr.bf16.mxu0 0
        %341 = vmatpush2.bf16.msra.mxu0 0
        %342 = vmatprep.subr.bf16.mxu0 0
        %343 = vmatpush2.bf16.msra.mxu0 0
        %344 = vmatprep.subr.bf16.mxu0 0
        %345 = vmatpush2.bf16.msra.mxu0 0
        %346 = vmatprep.subr.bf16.mxu0 0
        %347 = vmatpush2.bf16.msra.mxu0 0
        %348 = vmatprep.subr.bf16.mxu0 0
        %349 = vmatpush2.bf16.msra.mxu0 0
        %350 = vmatprep.subr.bf16.mxu0 0
        %351 = vmatpush2.bf16.msra.mxu0 0
        %352 = vmatprep.mubr.bf16.mxu0 0
        %353 = vmatmul.mubr.bf16.gmra.mxu0 %v318
        %v354 = vpop.f32.mrf.mxu0
        %v355 = vadd.f32 0.0, %v354
        %v356 = vpop.f32.mrf.mxu0
        %v357 = vadd.f32 0.0, %v356
        %v358 = vpop.f32.mrf.mxu0
        %v359 = vadd.f32 0.0, %v358
        %v360 = vpop.f32.mrf.mxu0
        %v361 = vadd.f32 0.0, %v360
        %362 = vdwg.mxu0
        %v363 = vld [vmem:[%s257] sm:$0xf]
        %v364 = vld [vmem:[%s257 + $0x4] sm:$0xf]
        %v367 = vunpack.c.l.b16 %v363
        %v368 = vunpack.c.l.b16 %v364
        %v369 = vpack.c.b16 %v368, %v367
        %v371 = vsel %vm316, %v369, 0
        %373 = vmatprep.subr.bf16.mxu0 0
        %374 = vmatpush1.bf16.msra.mxu0 0
        %375 = vmatprep.subr.bf16.mxu0 0
        %376 = vmatpush1.bf16.msra.mxu0 0
        %377 = vmatprep.subr.bf16.mxu0 0
        %378 = vmatpush1.bf16.msra.mxu0 0
        %379 = vmatprep.subr.bf16.mxu0 0
        %380 = vmatpush1.bf16.msra.mxu0 0
        %381 = vmatprep.subr.bf16.mxu0 0
        %382 = vmatpush1.bf16.msra.mxu0 0
        %383 = vmatprep.subr.bf16.mxu0 0
        %384 = vmatpush1.bf16.msra.mxu0 0
        %385 = vmatprep.subr.bf16.mxu0 0
        %386 = vmatpush1.bf16.msra.mxu0 0
        %387 = vmatprep.subr.bf16.mxu0 %v313
        %388 = vmatpush1.bf16.msra.mxu0 %v312
        %389 = vmatprep.subr.bf16.mxu0 0
        %390 = vmatpush2.bf16.msra.mxu0 0
        %391 = vmatprep.subr.bf16.mxu0 0
        %392 = vmatpush2.bf16.msra.mxu0 0
        %393 = vmatprep.subr.bf16.mxu0 0
        %394 = vmatpush2.bf16.msra.mxu0 0
        %395 = vmatprep.subr.bf16.mxu0 0
        %396 = vmatpush2.bf16.msra.mxu0 0
        %397 = vmatprep.subr.bf16.mxu0 0
        %398 = vmatpush2.bf16.msra.mxu0 0
        %399 = vmatprep.subr.bf16.mxu0 0
        %400 = vmatpush2.bf16.msra.mxu0 0
        %401 = vmatprep.subr.bf16.mxu0 0
        %402 = vmatpush2.bf16.msra.mxu0 0
        %403 = vmatprep.subr.bf16.mxu0 0
        %404 = vmatpush2.bf16.msra.mxu0 0
        %405 = vmatprep.mubr.bf16.mxu0 0
        %406 = vmatmul.mubr.bf16.gmra.mxu0 %v371
        %v407 = vpop.f32.mrf.mxu0
        %v408 = vadd.f32 0.0, %v407
        %v409 = vpop.f32.mrf.mxu0
        %v410 = vadd.f32 0.0, %v409
        %v411 = vpop.f32.mrf.mxu0
        %v412 = vadd.f32 0.0, %v411
        %v413 = vpop.f32.mrf.mxu0
        %v414 = vadd.f32 0.0, %v413
        %415 = vdwg.mxu0
        %v416 = vpack.c.bf16 %v359, %v355
        %v417 = vpack.c.bf16 %v361, %v357
        %v422 = vunpack.c.l.b16 %v293
        %v423 = vunpack.c.l.b16 %v294
        %v424 = vunpack.c.l.b16 %v295
        %v425 = vunpack.c.l.b16 %v296
        %v426 = vpack.c.b16 %v423, %v422
        %v427 = vpack.c.b16 %v425, %v424
        %v429 = vsel %vm316, %v426, 0
        %v432 = vsel %vm316, %v427, 0
        %434 = vmatprep.subr.bf16.mxu0 0
        %435 = vmatpush1.bf16.msra.mxu0 0
        %436 = vmatprep.subr.bf16.mxu0 0
        %437 = vmatpush1.bf16.msra.mxu0 0
        %438 = vmatprep.subr.bf16.mxu0 0
        %439 = vmatpush1.bf16.msra.mxu0 0
        %440 = vmatprep.subr.bf16.mxu0 0
        %441 = vmatpush1.bf16.msra.mxu0 0
        %442 = vmatprep.subr.bf16.mxu0 0
        %443 = vmatpush1.bf16.msra.mxu0 0
        %444 = vmatprep.subr.bf16.mxu0 0
        %445 = vmatpush1.bf16.msra.mxu0 0
        %446 = vmatprep.subr.bf16.mxu0 0
        %447 = vmatpush1.bf16.msra.mxu0 0
        %448 = vmatprep.subr.bf16.mxu0 %v417
        %449 = vmatpush1.bf16.msra.mxu0 %v416
        %450 = vmatprep.subr.bf16.mxu0 0
        %451 = vmatpush2.bf16.msra.mxu0 0
        %452 = vmatprep.subr.bf16.mxu0 0
        %453 = vmatpush2.bf16.msra.mxu0 0
        %454 = vmatprep.subr.bf16.mxu0 0
        %455 = vmatpush2.bf16.msra.mxu0 0
        %456 = vmatprep.subr.bf16.mxu0 0
        %457 = vmatpush2.bf16.msra.mxu0 0
        %458 = vmatprep.subr.bf16.mxu0 0
        %459 = vmatpush2.bf16.msra.mxu0 0
        %460 = vmatprep.subr.bf16.mxu0 0
        %461 = vmatpush2.bf16.msra.mxu0 0
        %462 = vmatprep.subr.bf16.mxu0 0
        %463 = vmatpush2.bf16.msra.mxu0 0
        %464 = vmatprep.subr.bf16.mxu0 0
        %465 = vmatpush2.bf16.msra.mxu0 0
        %466 = vmatprep.mubr.bf16.mxu0 0
        %467 = vmatmul.mubr.bf16.gmra.mxu0 %v429
        %v468 = vpop.f32.mrf.mxu0
        %v469 = vadd.f32 0.0, %v468
        %v470 = vpop.f32.mrf.mxu0
        %v471 = vadd.f32 0.0, %v470
        %v472 = vpop.f32.mrf.mxu0
        %v473 = vadd.f32 0.0, %v472
        %v474 = vpop.f32.mrf.mxu0
        %v475 = vadd.f32 0.0, %v474
        %476 = vmatprep.mubr.bf16.mxu0 0
        %477 = vmatmul.mubr.bf16.gmra.mxu0 %v432
        %v478 = vpop.f32.mrf.mxu0
        %v479 = vadd.f32 0.0, %v478
        %v480 = vpop.f32.mrf.mxu0
        %v481 = vadd.f32 0.0, %v480
        %v482 = vpop.f32.mrf.mxu0
        %v483 = vadd.f32 0.0, %v482
        %v484 = vpop.f32.mrf.mxu0
        %v485 = vadd.f32 0.0, %v484
        %486 = vdwg.mxu0
        %v487 = vsub.f32 %v469, %v481
        %v488 = vsub.f32 %v473, %v485
        %v489 = vadd.f32 %v471, %v479
        %v490 = vadd.f32 %v475, %v483
        %v491 = vmul.f32 %v487, %v487
        %v492 = vmul.f32 %v488, %v488
        %v493 = vmul.f32 %v489, %v489
        %v494 = vmul.f32 %v490, %v490
        %v495 = vadd.f32 %v491, %v493
        %v496 = vadd.f32 %v492, %v494
        %v497 = vrsqrt.pop %v495
        %v498 = vmul.f32 %v495, %v497
        %vm499 = vcmp.eq.f32.partialorder %v495, inf
        %v500 = vsel %vm499, %v495, %v498
        %vm501 = vcmp.eq.f32.partialorder %v495, 0.0
        %v502 = vand.u32 %v495, 2147483648
        %v503 = vsel %vm501, %v502, %v500
        %v504 = vrsqrt.pop %v496
        %v505 = vmul.f32 %v496, %v504
        %vm506 = vcmp.eq.f32.partialorder %v496, inf
        %v507 = vsel %vm506, %v496, %v505
        %vm508 = vcmp.eq.f32.partialorder %v496, 0.0
        %v509 = vand.u32 %v496, 2147483648
        %v510 = vsel %vm508, %v509, %v507
        %v511 = vpack.c.bf16 %v412, %v408
        %v512 = vpack.c.bf16 %v414, %v410
        %513 = vmatprep.subr.bf16.mxu0 0
        %514 = vmatpush1.bf16.msra.mxu0 0
        %515 = vmatprep.subr.bf16.mxu0 0
        %516 = vmatpush1.bf16.msra.mxu0 0
        %517 = vmatprep.subr.bf16.mxu0 0
        %518 = vmatpush1.bf16.msra.mxu0 0
        %519 = vmatprep.subr.bf16.mxu0 0
        %520 = vmatpush1.bf16.msra.mxu0 0
        %521 = vmatprep.subr.bf16.mxu0 0
        %522 = vmatpush1.bf16.msra.mxu0 0
        %523 = vmatprep.subr.bf16.mxu0 0
        %524 = vmatpush1.bf16.msra.mxu0 0
        %525 = vmatprep.subr.bf16.mxu0 0
        %526 = vmatpush1.bf16.msra.mxu0 0
        %527 = vmatprep.subr.bf16.mxu0 %v512
        %528 = vmatpush1.bf16.msra.mxu0 %v511
        %529 = vmatprep.subr.bf16.mxu0 0
        %530 = vmatpush2.bf16.msra.mxu0 0
        %531 = vmatprep.subr.bf16.mxu0 0
        %532 = vmatpush2.bf16.msra.mxu0 0
        %533 = vmatprep.subr.bf16.mxu0 0
        %534 = vmatpush2.bf16.msra.mxu0 0
        %535 = vmatprep.subr.bf16.mxu0 0
        %536 = vmatpush2.bf16.msra.mxu0 0
        %537 = vmatprep.subr.bf16.mxu0 0
        %538 = vmatpush2.bf16.msra.mxu0 0
        %539 = vmatprep.subr.bf16.mxu0 0
        %540 = vmatpush2.bf16.msra.mxu0 0
        %541 = vmatprep.subr.bf16.mxu0 0
        %542 = vmatpush2.bf16.msra.mxu0 0
        %543 = vmatprep.subr.bf16.mxu0 0
        %544 = vmatpush2.bf16.msra.mxu0 0
        %545 = vmatprep.mubr.bf16.mxu0 0
        %546 = vmatmul.mubr.bf16.gmra.mxu0 %v429
        %v547 = vpop.f32.mrf.mxu0
        %v548 = vadd.f32 0.0, %v547
        %v549 = vpop.f32.mrf.mxu0
        %v550 = vadd.f32 0.0, %v549
        %v551 = vpop.f32.mrf.mxu0
        %v552 = vadd.f32 0.0, %v551
        %v553 = vpop.f32.mrf.mxu0
        %v554 = vadd.f32 0.0, %v553
        %555 = vmatprep.mubr.bf16.mxu0 0
        %556 = vmatmul.mubr.bf16.gmra.mxu0 %v432
        %v557 = vpop.f32.mrf.mxu0
        %v558 = vadd.f32 0.0, %v557
        %v559 = vpop.f32.mrf.mxu0
        %v560 = vadd.f32 0.0, %v559
        %v561 = vpop.f32.mrf.mxu0
        %v562 = vadd.f32 0.0, %v561
        %v563 = vpop.f32.mrf.mxu0
        %v564 = vadd.f32 0.0, %v563
        %565 = vdwg.mxu0
        %v566 = vsub.f32 %v548, %v560
        %v567 = vsub.f32 %v552, %v564
        %v568 = vadd.f32 %v550, %v558
        %v569 = vadd.f32 %v554, %v562
        %v570 = vmul.f32 %v566, %v566
        %v571 = vmul.f32 %v567, %v567
        %v572 = vmul.f32 %v568, %v568
        %v573 = vmul.f32 %v569, %v569
        %v574 = vadd.f32 %v570, %v572
        %v575 = vadd.f32 %v571, %v573
        %v576 = vrsqrt.pop %v574
        %v577 = vmul.f32 %v574, %v576
        %vm578 = vcmp.eq.f32.partialorder %v574, inf
        %v579 = vsel %vm578, %v574, %v577
        %vm580 = vcmp.eq.f32.partialorder %v574, 0.0
        %v581 = vand.u32 %v574, 2147483648
        %v582 = vsel %vm580, %v581, %v579
        %v583 = vrsqrt.pop %v575
        %v584 = vmul.f32 %v575, %v583
        %vm585 = vcmp.eq.f32.partialorder %v575, inf
        %v586 = vsel %vm585, %v575, %v584
        %vm587 = vcmp.eq.f32.partialorder %v575, 0.0
        %v588 = vand.u32 %v575, 2147483648
        %v589 = vsel %vm587, %v588, %v586
        %v590 = vsub.f32 %v503, %v582
        %v591 = vsub.f32 %v510, %v589
        %v592 = vand.u32 2147483647, %v590
        %v593 = vand.u32 2147483647, %v591
        %v594 = vadd.f32 %v592, 0.0
        %v595 = vadd.f32 %v593, 0.0
        %v596 = vsel %vm316, %v594, 0.0
        %v597 = vsel %vm316, %v595, 0.0
        %v598 = vadd.f32 %v596, %v597
        %599 = vadd.xlane.f32.xlu0 %v598
        %v600 = vpop.xlane.xlu0 %599
        %v601 = vrot.slane %v600, 4
        %v602 = vadd.f32 %v600, %v601
        %v603 = vrot.slane %v602, 2
        %v604 = vadd.f32 %v602, %v603
        %v605 = vrot.slane %v604, 1
        %v606 = vadd.f32 %v604, %v605
        %s607 = vtos %v606
        %vm610 = vcmask 1042432
        %v611 = vrot.slane %v594, 5
        %v612 = vrot.slane %v595, 5
        %v613 = vsel %vm610, %v611, %v612
        %614 = vrot.lane.b32.xlu0 %v613, 123
        %v615 = vpop.permute.xlu0 %614
        %vm617 = vcmask 46080
        %v618 = vsel %vm617, %v615, 0.0
        %619 = vadd.xlane.f32.xlu0 %v618
        %v620 = vpop.xlane.xlu0 %619
        %v621 = vrot.slane %v620, 4
        %v622 = vadd.f32 %v620, %v621
        %v623 = vrot.slane %v622, 2
        %v624 = vadd.f32 %v622, %v623
        %v625 = vrot.slane %v624, 1
        %v626 = vadd.f32 %v624, %v625
        %s627 = vtos %v626
        %s628 = ssub.f32 %s607, %s627
        %v629 = vstv %s628
        %630 = vst [vmem:[%s285] sm:$0x1] %v629
        %v631 = vstv %s607
        %632 = vst [vmem:[%s291] sm:$0x1] %v631
        %s633 = sand.u32 %s131, 1
        %s634 = scalar_lea.sflag [#allocation4], %s633
        %s635 = sand.u32 %s131, 1
        %s636 = scalar_lea.vmem [#allocation7], %s635
        %s637 = sand.u32 %s157, 1
        %s638 = scalar_lea.sflag [#allocation9], %s637
        %s639 = sand.u32 %s157, 1
        %s640 = scalar_lea.vmem [#allocation8], %s639
        // Predicated region
        $region45: #{tpu_custom_call.1} parent=35 // pred_check
          %p641 = pneg %p141
        $region46: #{tpu_custom_call.1} parent=35 // pred_check_branch
          %643 = sbr.rel (%p641) target = $region48
        $region47: #{tpu_custom_call.1} parent=35 // pred_region
          %s645 = ssub.s32 16, 16
          %646 = vsyncadd %s634, %s645
          %s647 = smul.addr %s29, 16
          %s648 = scalar_lea.hbm %s4, %s647
          %s650 = sshll.u32 %s636, 4
          %s651 = int_to_ptr.vmem [resolvable:$true] %s650
          %653 = dma.vmem_to_hbm [thread:$0]  %s651, 16, %s648, %s634
        $region48: #{tpu_custom_call.1} parent=35 // pred_fallthru
          _
        // Predicated region
        $region49: #{tpu_custom_call.1} parent=35 // pred_check
          %p654 = pneg %p167
        $region50: #{tpu_custom_call.1} parent=35 // pred_check_branch
          %656 = sbr.rel (%p654) target = $region52
        $region51: #{tpu_custom_call.1} parent=35 // pred_region
          %s658 = ssub.s32 16, 16
          %659 = vsyncadd %s638, %s658
          %s660 = smul.addr %s29, 16
          %s661 = scalar_lea.hbm %s5, %s660
          %s663 = sshll.u32 %s640, 4
          %s664 = int_to_ptr.vmem [resolvable:$true] %s663
          %666 = dma.vmem_to_hbm [thread:$0]  %s664, 16, %s661, %s638
        $region52: #{tpu_custom_call.1} parent=35 // pred_fallthru
          _
      $region36: #{tpu_custom_call.1} parent=5 // pred_fallthru
        _
      %p667 = scmp.le.s32.totalorder 2, %s24
      // Predicated region
      $region53: #{tpu_custom_call.1} parent=5 // pred_check
        %p668 = pneg %p667
      $region54: #{tpu_custom_call.1} parent=5 // pred_check_branch
        %670 = sbr.rel (%p668) target = $region56
      $region55: #{tpu_custom_call.1} parent=5 // pred_region
        %s671 = ssub.s32 %s24, 2
        // Predicated region
        $region57: #{tpu_custom_call.1} parent=55 // pred_check
          %p672 = pneg %p147
        $region58: #{tpu_custom_call.1} parent=55 // pred_check_branch
          %674 = sbr.rel (%p672) target = $region60
        $region59: #{tpu_custom_call.1} parent=55 // pred_region
          %s675 = sand.u32 %s132, 1
          %s676 = scalar_lea.sflag [#allocation4], %s675
          %s677 = sand.u32 %s132, 1
          %s678 = scalar_lea.vmem [#allocation7], %s677
          %679 = dma.done %s676, 16
        $region60: #{tpu_custom_call.1} parent=55 // pred_fallthru
          _
        // Predicated region
        $region61: #{tpu_custom_call.1} parent=55 // pred_check
          %p680 = pneg %p173
        $region62: #{tpu_custom_call.1} parent=55 // pred_check_branch
          %682 = sbr.rel (%p680) target = $region64
        $region63: #{tpu_custom_call.1} parent=55 // pred_region
          %s683 = sand.u32 %s158, 1
          %s684 = scalar_lea.sflag [#allocation9], %s683
          %s685 = sand.u32 %s158, 1
          %s686 = scalar_lea.vmem [#allocation8], %s685
          %687 = dma.done %s684, 16
        $region64: #{tpu_custom_call.1} parent=55 // pred_fallthru
          _
      $region56: #{tpu_custom_call.1} parent=5 // pred_fallthru
        _
    $region6: #{tpu_custom_call.1} parent=1 // loop_footer
      %s28 = sadd.s32 1, %s24
    $region7: #{tpu_custom_call.1} parent=1 // loop_footer_branch
      %23 = sbr.rel target = $region3
    $region8: #{tpu_custom_call.1} parent=1 // loop_exit
      _
    %688 = vsyncpa [#allocation3], 1
    %s689 = scalar_lea.sflag [#allocation3], 1
    %690 = vsyncpa %s689, 1
    %691 = vsyncpa [#allocation6], 1
    %s692 = scalar_lea.sflag [#allocation6], 1
    %693 = vsyncpa %s692, 1
    %694 = vsyncpa [#allocation4], 1
    %s695 = scalar_lea.sflag [#allocation4], 1
    %696 = vsyncpa %s695, 1
    %697 = vsyncpa [#allocation9], 1
    %s698 = scalar_lea.sflag [#allocation9], 1
    %699 = vsyncpa %s698, 1

</llo_original>
